<compile_context>
chip_gen: v5e
topology: v5e:2x2
jax: 0.10.0
libtpu: 0.0.40
codegen_flags: <defaults>
</compile_context>

<pallas_src>
import functools

import jax
import jax.numpy as jnp
from jax.experimental import pallas as pl
from jax.experimental.pallas import tpu as pltpu


def _round_up(x, m):
    return ((x + m - 1) // m) * m


def _mixhop_layer_kernel(adj_ref, norm_all_ref, norm_row_ref,
                         feat_all_ref, feat_row_ref, w_ref, out_ref, *,
                         num_hops, out_cols_real, epilogue):
    """One MixHop layer (+ fused activation) for one row tile of nodes.

    adj_ref      : (tm, N)   bf16  0/1 adjacency rows of this tile (exact in bf16)
    norm_all_ref : (N, 1)    f32   deg^{-1/2}, all nodes
    norm_row_ref : (tm, 1)   f32   deg^{-1/2}, this row tile
    feat_all_ref : (N, Din)  f32   features, all nodes (needed for propagation)
    feat_row_ref : (tm, Din) f32   features, this row tile (hop-0 projection)
    w_ref        : (num_hops, Din, Cpad) f32  per-hop weights; hop k occupies
                   output columns [k*dout:(k+1)*dout], zeros elsewhere, so the
                   running sum over hops IS the hop-concat (lane-dense, no
                   jnp.concatenate).
    out_ref      : (tm, Cpad) f32
    """
    # Hop 0: local projection of this row tile (f32 matmul; K is tiny).
    acc = jnp.dot(feat_row_ref[...], w_ref[0],
                  preferred_element_type=jnp.float32)

    if num_hops >= 2:
        # Hop 1: (P @ feat)[rows] = norm_rows * (A[rows, :] @ (norm * feat)),
        # i.e. the symmetric normalization P = D^{-1/2} A D^{-1/2} is folded
        # into the feature vectors so the dense normalized adjacency is never
        # materialized.  Both MXU operands are bf16 (adjacency already bf16 &
        # exact; the feature operand is rounded), accumulation stays f32.
        scaled = (norm_all_ref[...] * feat_all_ref[...]).astype(jnp.bfloat16)
        pfeat = norm_row_ref[...] * jnp.dot(adj_ref[...], scaled,
                                            preferred_element_type=jnp.float32)
        acc = acc + jnp.dot(pfeat, w_ref[1],
                            preferred_element_type=jnp.float32)

    if epilogue == "relu":
        out_ref[...] = jnp.maximum(acc, 0.0).astype(out_ref.dtype)
    elif epilogue == "log_softmax":
        # log_softmax over the real output columns only; padded lanes -> 0.
        col = jax.lax.broadcasted_iota(jnp.int32, acc.shape, 1)
        valid = col < out_cols_real
        masked = jnp.where(valid, acc, -1e30)
        m = jnp.max(masked, axis=1, keepdims=True)
        s = masked - m
        lse = jnp.log(jnp.sum(jnp.exp(s), axis=1, keepdims=True))
        out_ref[...] = jnp.where(valid, s - lse, 0.0).astype(out_ref.dtype)
    else:
        out_ref[...] = acc.astype(out_ref.dtype)


def _pick_row_tile(n):
    # Prefer row tiles that fill the MXU (256-wide on v6e/v7x, 128 on v5e) and
    # divide N exactly; tiny demo graphs fall back to a single full-size tile.
    for tm in (256, 128):
        if n % tm == 0:
            return tm
    return n


def _mixhop_layer_call(adj_bf16, norm_c, feat, w_packed, *, epilogue,
                       out_cols_real):
    n, din = feat.shape
    num_hops, din_w, cpad = w_packed.shape
    assert din_w == din
    tm = _pick_row_tile(n)
    grid = (n // tm,)

    kernel = functools.partial(_mixhop_layer_kernel, num_hops=num_hops,
                               out_cols_real=out_cols_real, epilogue=epilogue)
    return pl.pallas_call(
        kernel,
        out_shape=jax.ShapeDtypeStruct((n, cpad), jnp.float32),
        grid=grid,
        in_specs=[
            pl.BlockSpec((tm, n), lambda i: (i, 0)),                  # adj rows
            pl.BlockSpec((n, 1), lambda i: (0, 0)),                   # norm (all)
            pl.BlockSpec((tm, 1), lambda i: (i, 0)),                  # norm (rows)
            pl.BlockSpec((n, din), lambda i: (0, 0)),                 # feat (all)
            pl.BlockSpec((tm, din), lambda i: (i, 0)),                # feat (rows)
            pl.BlockSpec((num_hops, din, cpad), lambda i: (0, 0, 0)), # weights
        ],
        out_specs=pl.BlockSpec((tm, cpad), lambda i: (i, 0)),
        # Row tiles are independent -> shard across both TCs on v7x.
        compiler_params=pltpu.CompilerParams(
            dimension_semantics=("parallel",)),
    )(adj_bf16, norm_c, norm_c, feat, feat, w_packed)


def _pack_hop_weights(w, k_pad, c_pad):
    """(num_hops, din, dout) -> (num_hops, k_pad, c_pad).

    Hop k's weight is placed at output columns [k*dout:(k+1)*dout]; everything
    else is exactly zero, so summing per-hop projections reproduces the
    hop-concat directly (lane-dense accumulator == concat).

    NOTE: this trick multiplies each hop against a weight that is
    (num_hops-1)/num_hops zeros -> O(num_hops^2) MXU columns.  Fine at
    num_hops=2; for >2 hops accumulate each hop's (N, H) projection into its
    own 128-aligned column slab of a VMEM scratch accumulator instead.
    """
    num_hops, din, dout = w.shape
    wp = jnp.zeros((num_hops, k_pad, c_pad), w.dtype)
    for k in range(num_hops):
        wp = wp.at[k, :din, k * dout:(k + 1) * dout].set(w[k])
    return wp


def mixhop_gcn_forward(adj, norm_c, features, w1, w2):
    """Full MixHopGCN forward (inference / eval).

    Returns (N, num_hops*out_dim) log-probabilities.  Dropout is the identity
    (training=False).
    """
    num_hops, in_dim, hidden = w1.shape
    _, hid_cat, out_dim = w2.shape
    assert hid_cat == num_hops * hidden
    # TODO(synk): num_hops > 2 would need the full adjacency per row tile (or a
    # multi-pass propagation chain); only the module default (2 hops) is tiled.
    assert num_hops <= 2

    c1_pad = _round_up(num_hops * hidden, 128)   # hidden concat -> full 128-lane slab
    c2_real = num_hops * out_dim
    c2_pad = _round_up(c2_real, 128)             # lane-dense output store

    # One-time packing (would live at module init in a real deployment).
    # 0/1 adjacency is exact in bf16 -> halves HBM/VMEM bytes of the dominant
    # read.  (A weighted / pre-normalized adjacency would NOT be exact in bf16.)
    adj_bf16 = adj.astype(jnp.bfloat16)
    w1p = _pack_hop_weights(w1, in_dim, c1_pad)   # (H, in_dim, 128): no K padding
    w2p = _pack_hop_weights(w2, c1_pad, c2_pad)   # (H, 128, 128): K padded to h slab

    # Layer 1 + ReLU (input dropout = identity at inference).
    h = _mixhop_layer_call(adj_bf16, norm_c, features, w1p,
                           epilogue="relu", out_cols_real=c1_pad)
    # Layer 2 + log_softmax (hidden dropout = identity at inference).
    out_pad = _mixhop_layer_call(adj_bf16, norm_c, h, w2p,
                                 epilogue="log_softmax", out_cols_real=c2_real)
    return out_pad[:, :c2_real]


def xavier_uniform(key, shape):
    fan_in, fan_out = shape
    limit = (6.0 / (fan_in + fan_out)) ** 0.5
    return jax.random.uniform(key, shape, jnp.float32, -limit, limit)


def reference_forward(adj, norm_c, x, w1, w2):
    """Pure-JAX (f32) reference mirroring the PyTorch semantics."""
    p = adj * norm_c * norm_c.T

    def layer(feat, w):
        feats = [feat]
        cur = feat
        for _ in range(1, w.shape[0]):
            cur = p @ cur
            feats.append(cur)
        return jnp.concatenate([f @ w[k] for k, f in enumerate(feats)], axis=1)

    h = jnp.maximum(layer(x, w1), 0.0)
    return jax.nn.log_softmax(layer(h, w2), axis=1)


if __name__ == "__main__":
    key = jax.random.PRNGKey(0)
    k_adj, k_feat, k_w10, k_w11, k_w20, k_w21 = jax.random.split(key, 6)

    # Small synthetic graph / model sizes.
    N = 64
    IN_DIM = 16
    HIDDEN = 32
    OUT_DIM = 8
    NUM_HOPS = 2    # combine = 'concat'

    # Random undirected 0/1 graph with self-loops (dense adjacency).
    rand = jax.random.uniform(k_adj, (N, N))
    adj = (rand < 0.1).astype(jnp.float32)
    adj = jnp.maximum(adj, adj.T)                           # symmetrize
    adj = jnp.maximum(adj, jnp.eye(N, dtype=jnp.float32))   # self loops
    deg = jnp.sum(adj, axis=1, keepdims=True)
    norm_c = jnp.power(jnp.maximum(deg, 1.0), -0.5)         # (N, 1) == graph.ndata['norm']

    # Node features.
    features = jax.random.normal(k_feat, (N, IN_DIM), dtype=jnp.float32)

    # Deterministic xavier-uniform weights, stacked per hop.
    w1 = jnp.stack([xavier_uniform(k_w10, (IN_DIM, HIDDEN)),
                    xavier_uniform(k_w11, (IN_DIM, HIDDEN))])               # layer1
    w2 = jnp.stack([xavier_uniform(k_w20, (HIDDEN * NUM_HOPS, OUT_DIM)),
                    xavier_uniform(k_w21, (HIDDEN * NUM_HOPS, OUT_DIM))])   # layer2

    out = mixhop_gcn_forward(adj, norm_c, features, w1, w2)
    out = jax.block_until_ready(out)

    ref = reference_forward(adj, norm_c, features, w1, w2)
    assert out.shape == (N, NUM_HOPS * OUT_DIM)
    # Tolerance widened slightly (1e-3 -> 2e-3) to account for the bf16 MXU
    # operands in the adjacency matmul (accumulation remains f32).
    assert jnp.allclose(out, ref, atol=2e-3, rtol=2e-3), \
        "Pallas output mismatch vs reference"

    print("KERNEL_OK")
</pallas_src>

<mosaic_0001>
module attributes {stable_mosaic.version = 11 : i64} {
  func.func @_mixhop_layer_kernel(%arg0: i32, %arg1: memref<64x64xbf16, #tpu.memory_space<vmem>>, %arg2: memref<64x1xf32, #tpu.memory_space<vmem>>, %arg3: memref<64x1xf32, #tpu.memory_space<vmem>>, %arg4: memref<64x16xf32, #tpu.memory_space<vmem>>, %arg5: memref<64x16xf32, #tpu.memory_space<vmem>>, %arg6: memref<2x16x128xf32, #tpu.memory_space<vmem>>, %arg7: memref<64x128xf32, #tpu.memory_space<vmem>>) attributes {dimension_semantics = [#tpu.dimension_semantics<parallel>], iteration_bounds = array<i64: 1>, scalar_prefetch = 0 : i64, scratch_operands = 0 : i64, tpu.core_type = #tpu.core_type<tc>, window_params = [{transform_indices = @transform_0, window_bounds = array<i64: 64, 64>}, {pipeline_mode = #tpu.pipeline_mode<synchronous>, transform_indices = @transform_1, window_bounds = array<i64: 64, 1>}, {transform_indices = @transform_2, window_bounds = array<i64: 64, 1>}, {pipeline_mode = #tpu.pipeline_mode<synchronous>, transform_indices = @transform_3, window_bounds = array<i64: 64, 16>}, {transform_indices = @transform_4, window_bounds = array<i64: 64, 16>}, {pipeline_mode = #tpu.pipeline_mode<synchronous>, transform_indices = @transform_5, window_bounds = array<i64: 2, 16, 128>}, {transform_indices = @transform_6, window_bounds = array<i64: 64, 128>}]} {
    %c0 = arith.constant 0 : index
    %c0_0 = arith.constant 0 : index
    %0 = vector.load %arg5[%c0, %c0_0] : memref<64x16xf32, #tpu.memory_space<vmem>>, vector<64x16xf32>
    %c0_1 = arith.constant 0 : index
    %c0_2 = arith.constant 0 : index
    %c0_3 = arith.constant 0 : index
    %1 = vector.load %arg6[%c0_1, %c0_2, %c0_3] : memref<2x16x128xf32, #tpu.memory_space<vmem>>, vector<1x16x128xf32>
    %2 = vector.shape_cast %1 : vector<1x16x128xf32> to vector<16x128xf32>
    %cst = arith.constant dense<0.000000e+00> : vector<64x128xf32>
    %3 = tpu.matmul %0, %2, %cst {dimension_numbers = #tpu.dot_dimension_numbers<[1], [0], [0], [1], [0, 0, 1, 1], [], []>} : vector<64x16xf32>, vector<16x128xf32>, vector<64x128xf32> -> vector<64x128xf32>
    %c0_4 = arith.constant 0 : index
    %c0_5 = arith.constant 0 : index
    %4 = vector.load %arg2[%c0_4, %c0_5] : memref<64x1xf32, #tpu.memory_space<vmem>>, vector<64x1xf32>
    %c0_6 = arith.constant 0 : index
    %c0_7 = arith.constant 0 : index
    %5 = vector.load %arg4[%c0_6, %c0_7] : memref<64x16xf32, #tpu.memory_space<vmem>>, vector<64x16xf32>
    %6 = vector.broadcast %4 : vector<64x1xf32> to vector<64x16xf32>
    %7 = arith.mulf %6, %5 : vector<64x16xf32>
    %8 = arith.truncf %7 : vector<64x16xf32> to vector<64x16xbf16>
    %c0_8 = arith.constant 0 : index
    %c0_9 = arith.constant 0 : index
    %9 = vector.load %arg3[%c0_8, %c0_9] : memref<64x1xf32, #tpu.memory_space<vmem>>, vector<64x1xf32>
    %c0_10 = arith.constant 0 : index
    %c0_11 = arith.constant 0 : index
    %10 = vector.load %arg1[%c0_10, %c0_11] : memref<64x64xbf16, #tpu.memory_space<vmem>>, vector<64x64xbf16>
    %cst_12 = arith.constant dense<0.000000e+00> : vector<64x16xf32>
    %11 = tpu.matmul %10, %8, %cst_12 {dimension_numbers = #tpu.dot_dimension_numbers<[1], [0], [0], [1], [0, 0, 1, 1], [], []>} : vector<64x64xbf16>, vector<64x16xbf16>, vector<64x16xf32> -> vector<64x16xf32>
    %12 = vector.broadcast %9 : vector<64x1xf32> to vector<64x16xf32>
    %13 = arith.mulf %12, %11 : vector<64x16xf32>
    %c1 = arith.constant 1 : index
    %c0_13 = arith.constant 0 : index
    %c0_14 = arith.constant 0 : index
    %14 = vector.load %arg6[%c1, %c0_13, %c0_14] : memref<2x16x128xf32, #tpu.memory_space<vmem>>, vector<1x16x128xf32>
    %15 = vector.shape_cast %14 : vector<1x16x128xf32> to vector<16x128xf32>
    %cst_15 = arith.constant dense<0.000000e+00> : vector<64x128xf32>
    %16 = tpu.matmul %13, %15, %cst_15 {dimension_numbers = #tpu.dot_dimension_numbers<[1], [0], [0], [1], [0, 0, 1, 1], [], []>} : vector<64x16xf32>, vector<16x128xf32>, vector<64x128xf32> -> vector<64x128xf32>
    %17 = arith.addf %3, %16 : vector<64x128xf32>
    %cst_16 = arith.constant 0.000000e+00 : f32
    %18 = vector.broadcast %cst_16 : f32 to vector<64x128xf32>
    %19 = arith.maximumf %17, %18 : vector<64x128xf32>
    %c0_17 = arith.constant 0 : index
    %c0_18 = arith.constant 0 : index
    %20 = vector.load %arg7[%c0_17, %c0_18] : memref<64x128xf32, #tpu.memory_space<vmem>>, vector<64x128xf32>
    tpu.vector_store %arg7[%c0_17, %c0_18], %19 {strides = array<i32>} : memref<64x128xf32, #tpu.memory_space<vmem>>, vector<64x128xf32>,
    return
  }
  func.func @transform_0(%arg0: i32) -> (i32, i32) {
    %c0_i32 = arith.constant 0 : i32
    %c0_i32_0 = arith.constant 0 : i32
    return %arg0, %c0_i32 : i32, i32
  }
  func.func @transform_1(%arg0: i32) -> (i32, i32) {
    %c0_i32 = arith.constant 0 : i32
    %c0_i32_0 = arith.constant 0 : i32
    %c0_i32_1 = arith.constant 0 : i32
    return %c0_i32, %c0_i32_0 : i32, i32
  }
  func.func @transform_2(%arg0: i32) -> (i32, i32) {
    %c0_i32 = arith.constant 0 : i32
    %c0_i32_0 = arith.constant 0 : i32
    return %arg0, %c0_i32 : i32, i32
  }
  func.func @transform_3(%arg0: i32) -> (i32, i32) {
    %c0_i32 = arith.constant 0 : i32
    %c0_i32_0 = arith.constant 0 : i32
    %c0_i32_1 = arith.constant 0 : i32
    return %c0_i32, %c0_i32_0 : i32, i32
  }
  func.func @transform_4(%arg0: i32) -> (i32, i32) {
    %c0_i32 = arith.constant 0 : i32
    %c0_i32_0 = arith.constant 0 : i32
    return %arg0, %c0_i32 : i32, i32
  }
  func.func @transform_5(%arg0: i32) -> (i32, i32, i32) {
    %c0_i32 = arith.constant 0 : i32
    %c0_i32_0 = arith.constant 0 : i32
    %c0_i32_1 = arith.constant 0 : i32
    %c0_i32_2 = arith.constant 0 : i32
    return %c0_i32, %c0_i32_0, %c0_i32_1 : i32, i32, i32
  }
  func.func @transform_6(%arg0: i32) -> (i32, i32) {
    %c0_i32 = arith.constant 0 : i32
    %c0_i32_0 = arith.constant 0 : i32
    return %arg0, %c0_i32 : i32, i32
  }
}

</mosaic_0001>

<llo_original>
// kernel: tpu_custom_call.1
$region0: #{tpu_custom_call.1}
  #allocation0 [shape = 'u32[]', space=smem, size = 0x4, offset = 0x4, fixed_abs, tag = 'smem constant byte address 0x4 - core index']
  #allocation1 [shape = 'u32[72,128]{1,0:T(1,128)}', space=vmem, size = 0x9000, scoped, tag = 'internal scratch']
  %s0 = inlined_call_operand.vmem [shape: bf16[64,64], index: 0, kind: input, shape index: {}]
  %s1 = inlined_call_operand.vmem [shape: f32[64,1], index: 1, kind: input, shape index: {}]
  %s2 = inlined_call_operand.vmem [shape: f32[64,1], index: 2, kind: input, shape index: {}]
  %s3 = inlined_call_operand.vmem [shape: f32[64,16], index: 3, kind: input, shape index: {}]
  %s4 = inlined_call_operand.vmem [shape: f32[64,16], index: 4, kind: input, shape index: {}]
  %s5 = inlined_call_operand.vmem [shape: f32[2,16,128], index: 5, kind: input, shape index: {}]
  %s6 = inlined_call_operand.hbm [shape: f32[64,128], index: 6, kind: output, shape index: {}]
  %s7 = sld [smem:[#allocation0]]
  $region34: #{tpu_custom_call.1} parent=0
    _
  %s9 = ssub.s32 1, %s7
  %s10 = scalar_select 0, %s9, %s7
  $region1: #{tpu_custom_call.1} parent=0
    #allocation2 [shape = 'u8[32768]{0}', space=vmem, size = 0x8000, scoped, tag = 'output window, operand 0, single buffered']
    #allocation3 [shape = 's32[1]{0}', space=sflag, size = 0x4, scoped, tag = 'scoped memory for tpu_custom_call.1']
    %11 = vsyncpa [#allocation3], 0
    // Predicated region
    $region2: #{tpu_custom_call.1} parent=1 // pred_check
      _
    $region3: #{tpu_custom_call.1} parent=1 // pred_check_branch
      %13 = sbr.rel (0) target = $region5
    $region4: #{tpu_custom_call.1} parent=1 // pred_region
      _
    $region5: #{tpu_custom_call.1} parent=1 // pred_fallthru
      _
    // Predicated region
    $region6: #{tpu_custom_call.1} parent=1 // pred_check
      _
    $region7: #{tpu_custom_call.1} parent=1 // pred_check_branch
      %15 = sbr.rel (0) target = $region9
    $region8: #{tpu_custom_call.1} parent=1 // pred_region
      _
    $region9: #{tpu_custom_call.1} parent=1 // pred_fallthru
      _
    // Predicated region
    $region10: #{tpu_custom_call.1} parent=1 // pred_check
      _
    $region11: #{tpu_custom_call.1} parent=1 // pred_check_branch
      %17 = sbr.rel (0) target = $region13
    $region12: #{tpu_custom_call.1} parent=1 // pred_region
      _
    $region13: #{tpu_custom_call.1} parent=1 // pred_fallthru
      _
    // Predicated region
    $region14: #{tpu_custom_call.1} parent=1 // pred_check
      _
    $region15: #{tpu_custom_call.1} parent=1 // pred_check_branch
      %19 = sbr.rel (0) target = $region17
    $region16: #{tpu_custom_call.1} parent=1 // pred_region
      _
    $region17: #{tpu_custom_call.1} parent=1 // pred_fallthru
      _
    // Predicated region
    $region18: #{tpu_custom_call.1} parent=1 // pred_check
      _
    $region19: #{tpu_custom_call.1} parent=1 // pred_check_branch
      %21 = sbr.rel (0) target = $region21
    $region20: #{tpu_custom_call.1} parent=1 // pred_region
      _
    $region21: #{tpu_custom_call.1} parent=1 // pred_fallthru
      _
    // Predicated region
    $region22: #{tpu_custom_call.1} parent=1 // pred_check
      _
    $region23: #{tpu_custom_call.1} parent=1 // pred_check_branch
      %23 = sbr.rel (0) target = $region25
    $region24: #{tpu_custom_call.1} parent=1 // pred_region
      _
    $region25: #{tpu_custom_call.1} parent=1 // pred_fallthru
      _
    %v25 = vld [vmem:[%s4] sm:$0xff]
    %v26 = vld [vmem:[%s4 + $0x8] sm:$0xff]
    %v27 = vld [vmem:[%s4 + $0x10] sm:$0xff]
    %v28 = vld [vmem:[%s4 + $0x18] sm:$0xff]
    %v29 = vld [vmem:[%s4 + $0x20] sm:$0xff]
    %v30 = vld [vmem:[%s4 + $0x28] sm:$0xff]
    %v31 = vld [vmem:[%s4 + $0x30] sm:$0xff]
    %v32 = vld [vmem:[%s4 + $0x38] sm:$0xff]
    %v33 = vld [vmem:[%s5] sm:$0xff]
    %v34 = vld [vmem:[%s5 + $0x8] sm:$0xff]
    %v35 = vld [vmem:[%s1] sm:$0xff]
    %v36 = vld [vmem:[%s1 + $0x8] sm:$0xff]
    %v37 = vld [vmem:[%s1 + $0x10] sm:$0xff]
    %v38 = vld [vmem:[%s1 + $0x18] sm:$0xff]
    %v39 = vld [vmem:[%s1 + $0x20] sm:$0xff]
    %v40 = vld [vmem:[%s1 + $0x28] sm:$0xff]
    %v41 = vld [vmem:[%s1 + $0x30] sm:$0xff]
    %v42 = vld [vmem:[%s1 + $0x38] sm:$0xff]
    %v43 = vld [vmem:[%s3] sm:$0xff]
    %v44 = vld [vmem:[%s3 + $0x8] sm:$0xff]
    %v45 = vld [vmem:[%s3 + $0x10] sm:$0xff]
    %v46 = vld [vmem:[%s3 + $0x18] sm:$0xff]
    %v47 = vld [vmem:[%s3 + $0x20] sm:$0xff]
    %v48 = vld [vmem:[%s3 + $0x28] sm:$0xff]
    %v49 = vld [vmem:[%s3 + $0x30] sm:$0xff]
    %v50 = vld [vmem:[%s3 + $0x38] sm:$0xff]
    %52 = vset.pattern.permute.xlu0 0
    %53 = vperm.xlu0 %52, %v35
    %v54 = vpop.permute.xlu0 %53
    %57 = vset.pattern.permute.xlu0 0
    %58 = vperm.xlu0 %57, %v36
    %v59 = vpop.permute.xlu0 %58
    %62 = vset.pattern.permute.xlu0 0
    %63 = vperm.xlu0 %62, %v37
    %v64 = vpop.permute.xlu0 %63
    %67 = vset.pattern.permute.xlu0 0
    %68 = vperm.xlu0 %67, %v38
    %v69 = vpop.permute.xlu0 %68
    %72 = vset.pattern.permute.xlu0 0
    %73 = vperm.xlu0 %72, %v39
    %v74 = vpop.permute.xlu0 %73
    %77 = vset.pattern.permute.xlu0 0
    %78 = vperm.xlu0 %77, %v40
    %v79 = vpop.permute.xlu0 %78
    %82 = vset.pattern.permute.xlu0 0
    %83 = vperm.xlu0 %82, %v41
    %v84 = vpop.permute.xlu0 %83
    %87 = vset.pattern.permute.xlu0 0
    %88 = vperm.xlu0 %87, %v42
    %v89 = vpop.permute.xlu0 %88
    %v91 = vmul.f32 %v54, %v43
    %v92 = vmul.f32 %v59, %v44
    %v93 = vmul.f32 %v64, %v45
    %v94 = vmul.f32 %v69, %v46
    %v95 = vmul.f32 %v74, %v47
    %v96 = vmul.f32 %v79, %v48
    %v97 = vmul.f32 %v84, %v49
    %v98 = vmul.f32 %v89, %v50
    %v99 = vpack.c.bf16 %v92, %v91
    %v100 = vpack.c.bf16 %v94, %v93
    %v101 = vpack.c.bf16 %v96, %v95
    %v102 = vpack.c.bf16 %v98, %v97
    %v103 = vld [vmem:[%s2] sm:$0xff]
    %v104 = vld [vmem:[%s2 + $0x8] sm:$0xff]
    %v105 = vld [vmem:[%s2 + $0x10] sm:$0xff]
    %v106 = vld [vmem:[%s2 + $0x18] sm:$0xff]
    %v107 = vld [vmem:[%s2 + $0x20] sm:$0xff]
    %v108 = vld [vmem:[%s2 + $0x28] sm:$0xff]
    %v109 = vld [vmem:[%s2 + $0x30] sm:$0xff]
    %v110 = vld [vmem:[%s2 + $0x38] sm:$0xff]
    %v111 = vld [vmem:[%s0] sm:$0xf]
    %v112 = vld [vmem:[%s0 + $0x4] sm:$0xf]
    %v113 = vld [vmem:[%s0 + $0x8] sm:$0xf]
    %v114 = vld [vmem:[%s0 + $0xc] sm:$0xf]
    %v115 = vld [vmem:[%s0 + $0x10] sm:$0xf]
    %v116 = vld [vmem:[%s0 + $0x14] sm:$0xf]
    %v117 = vld [vmem:[%s0 + $0x18] sm:$0xf]
    %v118 = vld [vmem:[%s0 + $0x1c] sm:$0xf]
    %v127 = vunpack.c.l.b16 %v111
    %v128 = vunpack.c.l.b16 %v112
    %v129 = vunpack.c.l.b16 %v113
    %v130 = vunpack.c.l.b16 %v114
    %v131 = vunpack.c.l.b16 %v115
    %v132 = vunpack.c.l.b16 %v116
    %v133 = vunpack.c.l.b16 %v117
    %v134 = vunpack.c.l.b16 %v118
    %v135 = vpack.c.b16 %v128, %v127
    %v136 = vpack.c.b16 %v130, %v129
    %v137 = vpack.c.b16 %v132, %v131
    %v138 = vpack.c.b16 %v134, %v133
    %vm139 = vcmask 523264
    %v141 = vsel %vm139, %v135, 0
    %v144 = vsel %vm139, %v136, 0
    %v147 = vsel %vm139, %v137, 0
    %v150 = vsel %vm139, %v138, 0
    %152 = vmatpush.bf16.msra.mxu0 0
    %153 = vmatpush.bf16.msra.mxu0 0
    %154 = vmatpush.bf16.msra.mxu0 0
    %155 = vmatpush.bf16.msra.mxu0 0
    %156 = vmatpush.bf16.msra.mxu0 %v102
    %157 = vmatpush.bf16.msra.mxu0 %v101
    %158 = vmatpush.bf16.msra.mxu0 %v100
    %159 = vmatpush.bf16.msra.mxu0 %v99
    %160 = vmatmul.bf16.gmra.mxu0 %v141
    %v161 = vpop.f32.mrf.mxu0
    %v162 = vadd.f32 0.0, %v161
    %v163 = vpop.f32.mrf.mxu0
    %v164 = vadd.f32 0.0, %v163
    %165 = vmatmul.bf16.gmra.mxu0 %v144
    %v166 = vpop.f32.mrf.mxu0
    %v167 = vadd.f32 0.0, %v166
    %v168 = vpop.f32.mrf.mxu0
    %v169 = vadd.f32 0.0, %v168
    %170 = vmatmul.bf16.gmra.mxu0 %v147
    %v171 = vpop.f32.mrf.mxu0
    %v172 = vadd.f32 0.0, %v171
    %v173 = vpop.f32.mrf.mxu0
    %v174 = vadd.f32 0.0, %v173
    %175 = vmatmul.bf16.gmra.mxu0 %v150
    %v176 = vpop.f32.mrf.mxu0
    %v177 = vadd.f32 0.0, %v176
    %v178 = vpop.f32.mrf.mxu0
    %v179 = vadd.f32 0.0, %v178
    %180 = vdwg.mxu0
    %182 = vset.pattern.permute.xlu0 0
    %183 = vperm.xlu0 %182, %v103
    %v184 = vpop.permute.xlu0 %183
    %187 = vset.pattern.permute.xlu0 0
    %188 = vperm.xlu0 %187, %v104
    %v189 = vpop.permute.xlu0 %188
    %192 = vset.pattern.permute.xlu0 0
    %193 = vperm.xlu0 %192, %v105
    %v194 = vpop.permute.xlu0 %193
    %197 = vset.pattern.permute.xlu0 0
    %198 = vperm.xlu0 %197, %v106
    %v199 = vpop.permute.xlu0 %198
    %202 = vset.pattern.permute.xlu0 0
    %203 = vperm.xlu0 %202, %v107
    %v204 = vpop.permute.xlu0 %203
    %207 = vset.pattern.permute.xlu0 0
    %208 = vperm.xlu0 %207, %v108
    %v209 = vpop.permute.xlu0 %208
    %212 = vset.pattern.permute.xlu0 0
    %213 = vperm.xlu0 %212, %v109
    %v214 = vpop.permute.xlu0 %213
    %217 = vset.pattern.permute.xlu0 0
    %218 = vperm.xlu0 %217, %v110
    %v219 = vpop.permute.xlu0 %218
    %v221 = vmul.f32 %v184, %v162
    %v222 = vmul.f32 %v189, %v164
    %v223 = vmul.f32 %v194, %v167
    %v224 = vmul.f32 %v199, %v169
    %v225 = vmul.f32 %v204, %v172
    %v226 = vmul.f32 %v209, %v174
    %v227 = vmul.f32 %v214, %v177
    %v228 = vmul.f32 %v219, %v179
    %s229 = scalar_lea.vmem %s5, 16
    %v230 = vld [vmem:[%s229] sm:$0xff]
    %v231 = vld [vmem:[%s229 + $0x8] sm:$0xff]
    %vm232 = vcmask 130048
    %v234 = vsel %vm232, %v221, 0
    %v237 = vsel %vm232, %v222, 0
    %v240 = vsel %vm232, %v223, 0
    %v243 = vsel %vm232, %v224, 0
    %v246 = vsel %vm232, %v225, 0
    %v249 = vsel %vm232, %v226, 0
    %v252 = vsel %vm232, %v227, 0
    %v255 = vsel %vm232, %v228, 0
    %257 = vmatpush.msra.mxu0 0.0
    %258 = vmatpush.msra.mxu0 0.0
    %259 = vmatpush.msra.mxu0 0.0
    %260 = vmatpush.msra.mxu0 0.0
    %261 = vmatpush.msra.mxu0 0.0
    %262 = vmatpush.msra.mxu0 0.0
    %263 = vmatpush.msra.mxu0 0.0
    %264 = vmatpush.msra.mxu0 0.0
    %265 = vmatpush.msra.mxu0 0.0
    %266 = vmatpush.msra.mxu0 0.0
    %267 = vmatpush.msra.mxu0 0.0
    %268 = vmatpush.msra.mxu0 0.0
    %269 = vmatpush.msra.mxu0 0.0
    %270 = vmatpush.msra.mxu0 0.0
    %271 = vmatpush.msra.mxu0 %v231
    %272 = vmatpush.msra.mxu0 %v230
    %273 = vmatmul.f32.gmra.mxu0 %v234
    %v274 = vpop.f32.mrf.mxu0
    %v275 = vadd.f32 0.0, %v274
    %276 = vmatmul.f32.gmra.mxu0 %v237
    %v277 = vpop.f32.mrf.mxu0
    %v278 = vadd.f32 0.0, %v277
    %279 = vmatmul.f32.gmra.mxu0 %v240
    %v280 = vpop.f32.mrf.mxu0
    %v281 = vadd.f32 0.0, %v280
    %282 = vmatmul.f32.gmra.mxu0 %v243
    %v283 = vpop.f32.mrf.mxu0
    %v284 = vadd.f32 0.0, %v283
    %285 = vmatmul.f32.gmra.mxu0 %v246
    %v286 = vpop.f32.mrf.mxu0
    %v287 = vadd.f32 0.0, %v286
    %288 = vmatmul.f32.gmra.mxu0 %v249
    %v289 = vpop.f32.mrf.mxu0
    %v290 = vadd.f32 0.0, %v289
    %291 = vmatmul.f32.gmra.mxu0 %v252
    %v292 = vpop.f32.mrf.mxu0
    %v293 = vadd.f32 0.0, %v292
    %294 = vmatmul.f32.gmra.mxu0 %v255
    %v295 = vpop.f32.mrf.mxu0
    %v296 = vadd.f32 0.0, %v295
    %297 = vdwg.mxu0
    %v299 = vsel %vm232, %v25, 0
    %v302 = vsel %vm232, %v26, 0
    %v305 = vsel %vm232, %v27, 0
    %v308 = vsel %vm232, %v28, 0
    %v311 = vsel %vm232, %v29, 0
    %v314 = vsel %vm232, %v30, 0
    %v317 = vsel %vm232, %v31, 0
    %v320 = vsel %vm232, %v32, 0
    %322 = vmatpush.msra.mxu0 0.0
    %323 = vmatpush.msra.mxu0 0.0
    %324 = vmatpush.msra.mxu0 0.0
    %325 = vmatpush.msra.mxu0 0.0
    %326 = vmatpush.msra.mxu0 0.0
    %327 = vmatpush.msra.mxu0 0.0
    %328 = vmatpush.msra.mxu0 0.0
    %329 = vmatpush.msra.mxu0 0.0
    %330 = vmatpush.msra.mxu0 0.0
    %331 = vmatpush.msra.mxu0 0.0
    %332 = vmatpush.msra.mxu0 0.0
    %333 = vmatpush.msra.mxu0 0.0
    %334 = vmatpush.msra.mxu0 0.0
    %335 = vmatpush.msra.mxu0 0.0
    %336 = vmatpush.msra.mxu0 %v34
    %337 = vmatpush.msra.mxu0 %v33
    %338 = vmatmul.f32.gmra.mxu0 %v299
    %v339 = vpop.f32.mrf.mxu0
    %v340 = vadd.f32 %v275, %v339
    %341 = vmatmul.f32.gmra.mxu0 %v302
    %v342 = vpop.f32.mrf.mxu0
    %v343 = vadd.f32 %v278, %v342
    %344 = vmatmul.f32.gmra.mxu0 %v305
    %v345 = vpop.f32.mrf.mxu0
    %v346 = vadd.f32 %v281, %v345
    %347 = vmatmul.f32.gmra.mxu0 %v308
    %v348 = vpop.f32.mrf.mxu0
    %v349 = vadd.f32 %v284, %v348
    %350 = vmatmul.f32.gmra.mxu0 %v311
    %v351 = vpop.f32.mrf.mxu0
    %v352 = vadd.f32 %v287, %v351
    %353 = vmatmul.f32.gmra.mxu0 %v314
    %v354 = vpop.f32.mrf.mxu0
    %v355 = vadd.f32 %v290, %v354
    %356 = vmatmul.f32.gmra.mxu0 %v317
    %v357 = vpop.f32.mrf.mxu0
    %v358 = vadd.f32 %v293, %v357
    %359 = vmatmul.f32.gmra.mxu0 %v320
    %v360 = vpop.f32.mrf.mxu0
    %v361 = vadd.f32 %v296, %v360
    %362 = vdwg.mxu0
    %v363 = vmax.f32 %v340, 0.0
    %v364 = vmax.f32 %v343, 0.0
    %v365 = vmax.f32 %v346, 0.0
    %v366 = vmax.f32 %v349, 0.0
    %v367 = vmax.f32 %v352, 0.0
    %v368 = vmax.f32 %v355, 0.0
    %v369 = vmax.f32 %v358, 0.0
    %v370 = vmax.f32 %v361, 0.0
    %371 = vst [vmem:[#allocation2] sm:$0xff] %v363
    %372 = vst [vmem:[#allocation2 + $0x8] sm:$0xff] %v364
    %373 = vst [vmem:[#allocation2 + $0x10] sm:$0xff] %v365
    %374 = vst [vmem:[#allocation2 + $0x18] sm:$0xff] %v366
    %375 = vst [vmem:[#allocation2 + $0x20] sm:$0xff] %v367
    %376 = vst [vmem:[#allocation2 + $0x28] sm:$0xff] %v368
    %377 = vst [vmem:[#allocation2 + $0x30] sm:$0xff] %v369
    %378 = vst [vmem:[#allocation2 + $0x38] sm:$0xff] %v370
    // Predicated region
    $region26: #{tpu_custom_call.1} parent=1 // pred_check
      _
    $region27: #{tpu_custom_call.1} parent=1 // pred_check_branch
      %380 = sbr.rel (0) target = $region29
    $region28: #{tpu_custom_call.1} parent=1 // pred_region
      %382 = vsyncadd [#allocation3], 0
      %s383 = sshll.u32 [#allocation2], 4
      %s384 = int_to_ptr.vmem [resolvable:$true] %s383
      %s385 = sshll.u32 %s6, 4
      %s386 = int_to_ptr.hbm [resolvable:$true] %s385
      %391 = dma.vmem_to_hbm [thread:$0]  %s384, 1024, %s386, [#allocation3], 128, 128, 8
    $region29: #{tpu_custom_call.1} parent=1 // pred_fallthru
      _
    // Predicated region
    $region30: #{tpu_custom_call.1} parent=1 // pred_check
      _
    $region31: #{tpu_custom_call.1} parent=1 // pred_check_branch
      %393 = sbr.rel (0) target = $region33
    $region32: #{tpu_custom_call.1} parent=1 // pred_region
      %395 = dma.done [#allocation3], 1024
    $region33: #{tpu_custom_call.1} parent=1 // pred_fallthru
      _
    %396 = vsyncpa [#allocation3], 1

</llo_original>
